<compile_context>
chip_gen: v6e
topology: v6e:2x2x1
jax: 0.10.0
libtpu: 0.0.40
codegen_flags: <defaults>
</compile_context>

<pallas_src>
import functools

import jax
import jax.numpy as jnp
from jax.experimental import pallas as pl
from jax.experimental.pallas import tpu as pltpu


_LANE = 128                               # TPU lane width
_VPU_CIN_THRESHOLD = 16                   # below this, skip the MXU entirely
_TILE_BUDGET_BYTES = 16 * 1024 * 1024     # double-buffered (input + output) tile budget
_MAX_TILE_HW = 32768                      # cap on lanes per block
_VMEM_LIMIT_BYTES = 32 * 1024 * 1024      # safe on v5e/v6e (128 MiB) and v7x (64 MiB)


def _round_up(v, m):
    return ((v + m - 1) // m) * m


def _conv1x1_vpu_kernel(c_in, x_ref, w_ref, b_ref, o_ref):
    """Small-C_in path: unrolled VPU FMAs, weights/bias read as SMEM scalars.

    x_ref: (1, C_in, T) VMEM   w_ref: (3, C_in) SMEM   b_ref: (3,) SMEM
    o_ref: (1, 3, T)  VMEM
    """
    t = x_ref.shape[2]
    rows = []
    for c in range(3):
        acc = jnp.zeros((1, t), dtype=jnp.float32)
        for ci in range(c_in):
            acc = acc + w_ref[c, ci] * x_ref[0, ci:ci + 1, :].astype(jnp.float32)
        rows.append(acc + b_ref[c])
    out = jnp.concatenate(rows, axis=0)                 # (3, T)
    o_ref[0] = out.astype(o_ref.dtype)


def _conv1x1_mxu_kernel(x_ref, w_ref, b_ref, o_ref):
    """General path: (3, C_in) @ (C_in, T) on the MXU with f32 accumulation."""
    x = x_ref[0]                                        # (C_in, T)
    w = w_ref[...]                                      # (3, C_in)
    b = b_ref[...]                                      # (3, 1)
    out = jnp.dot(w, x, preferred_element_type=jnp.float32) + b
    o_ref[0] = out.astype(o_ref.dtype)


def conv_to_3_channels(x, weight, bias):
    """x: (N, C_in, H, W); weight: (3, C_in); bias: (3,) -> (N, 3, H, W)."""
    N, C_in, H, W = x.shape
    HW = H * W

    # ---- Spatial tile size: largest lane-dense tile under the VMEM budget. ----
    bytes_per_lane = 2 * (C_in + 3) * 4                 # dbl-buffered in + out per lane
    tile_cap = max(_LANE, (_TILE_BUDGET_BYTES // bytes_per_lane) // _LANE * _LANE)
    tile_cap = min(tile_cap, _MAX_TILE_HW)
    hw_128 = _round_up(HW, _LANE)
    tile_hw = hw_128 if hw_128 <= tile_cap else tile_cap
    hw_pad = _round_up(HW, tile_hw)
    grid_hw = hw_pad // tile_hw

    x_flat = x.reshape(N, C_in, HW)
    if hw_pad != HW:
        x_flat = jnp.pad(x_flat, ((0, 0), (0, 0), (0, hw_pad - HW)))

    x_spec = pl.BlockSpec((1, C_in, tile_hw), lambda n, j: (n, 0, j))
    o_spec = pl.BlockSpec((1, 3, tile_hw), lambda n, j: (n, 0, j))

    if C_in <= _VPU_CIN_THRESHOLD:
        kernel = functools.partial(_conv1x1_vpu_kernel, C_in)
        w_arg, b_arg = weight, bias
        w_spec = pl.BlockSpec(memory_space=pltpu.MemorySpace.SMEM)
        b_spec = pl.BlockSpec(memory_space=pltpu.MemorySpace.SMEM)
    else:
        kernel = _conv1x1_mxu_kernel
        w_arg, b_arg = weight, bias.reshape(3, 1)
        w_spec = pl.BlockSpec((3, C_in), lambda n, j: (0, 0))
        b_spec = pl.BlockSpec((3, 1), lambda n, j: (0, 0))

    out_flat = pl.pallas_call(
        kernel,
        out_shape=jax.ShapeDtypeStruct((N, 3, hw_pad), x.dtype),
        grid_spec=pltpu.PrefetchScalarGridSpec(
            num_scalar_prefetch=0,
            grid=(N, grid_hw),
            in_specs=[x_spec, w_spec, b_spec],
            out_specs=o_spec,
        ),
        compiler_params=pltpu.CompilerParams(
            dimension_semantics=("parallel", "parallel"),
            vmem_limit_bytes=_VMEM_LIMIT_BYTES,
        ),
    )(x_flat, w_arg, b_arg)

    return out_flat[:, :, :HW].reshape(N, 3, H, W)


if __name__ == "__main__":
    key = jax.random.PRNGKey(0)
    k_x, k_w, k_b, k_x2, k_w2, k_b2 = jax.random.split(key, 6)

    # Test 1: shapes consistent with the module (small C_in -> VPU/SMEM-weights path).
    N, C_in, H, W = 2, 4, 16, 16
    x = jax.random.normal(k_x, (N, C_in, H, W), dtype=jnp.float32)
    weight = jax.random.normal(k_w, (3, C_in), dtype=jnp.float32) * 0.1  # Conv2d weight (3,C,1,1)
    bias = jax.random.normal(k_b, (3,), dtype=jnp.float32) * 0.1
    out = jax.block_until_ready(conv_to_3_channels(x, weight, bias))
    ref = jnp.einsum("oc,nchw->nohw", weight, x) + bias[None, :, None, None]
    assert out.shape == (N, 3, H, W)
    assert jnp.allclose(out, ref, atol=1e-5, rtol=1e-5)

    # Test 2: larger C_in + non-multiple-of-128 spatial (MXU path + tail padding).
    N2, C2, H2, W2 = 1, 32, 9, 10
    x2 = jax.random.normal(k_x2, (N2, C2, H2, W2), dtype=jnp.float32)
    w2 = jax.random.normal(k_w2, (3, C2), dtype=jnp.float32) * 0.1
    b2 = jax.random.normal(k_b2, (3,), dtype=jnp.float32) * 0.1
    out2 = jax.block_until_ready(conv_to_3_channels(x2, w2, b2))
    ref2 = jnp.einsum("oc,nchw->nohw", w2, x2) + b2[None, :, None, None]
    assert out2.shape == (N2, 3, H2, W2)
    assert jnp.allclose(out2, ref2, atol=1e-5, rtol=1e-5)

    print("KERNEL_OK")
</pallas_src>

<mosaic_0001>
module attributes {stable_mosaic.version = 11 : i64} {
  func.func @_conv1x1_vpu_kernel(%arg0: i32, %arg1: i32, %arg2: memref<1x4x256xf32, #tpu.memory_space<vmem>>, %arg3: memref<3x4xf32, #tpu.memory_space<smem>>, %arg4: memref<3xf32, #tpu.memory_space<smem>>, %arg5: memref<1x3x256xf32, #tpu.memory_space<vmem>>) attributes {dimension_semantics = [#tpu.dimension_semantics<parallel>, #tpu.dimension_semantics<parallel>], iteration_bounds = array<i64: 2, 1>, scalar_prefetch = 0 : i64, scratch_operands = 0 : i64, tpu.core_type = #tpu.core_type<tc>, window_params = [{transform_indices = @transform_0, window_bounds = array<i64: 1, 4, 256>}, {transform_indices = @transform_1, window_bounds = array<i64: 3, 4>}, {transform_indices = @transform_2, window_bounds = array<i64: 3>}, {transform_indices = @transform_3, window_bounds = array<i64: 1, 3, 256>}]} {
    %cst = arith.constant 0.000000e+00 : f32
    %0 = vector.broadcast %cst : f32 to vector<1x256xf32>
    %c0 = arith.constant 0 : index
    %c0_0 = arith.constant 0 : index
    %1 = memref.load %arg3[%c0, %c0_0] : memref<3x4xf32, #tpu.memory_space<smem>>
    %c0_1 = arith.constant 0 : index
    %c0_2 = arith.constant 0 : index
    %c0_3 = arith.constant 0 : index
    %2 = vector.load %arg2[%c0_1, %c0_2, %c0_3] : memref<1x4x256xf32, #tpu.memory_space<vmem>>, vector<1x1x256xf32>
    %3 = vector.shape_cast %2 : vector<1x1x256xf32> to vector<1x256xf32>
    %4 = vector.broadcast %1 : f32 to vector<1x256xf32>
    %5 = arith.mulf %4, %3 : vector<1x256xf32>
    %6 = arith.addf %0, %5 : vector<1x256xf32>
    %c0_4 = arith.constant 0 : index
    %c1 = arith.constant 1 : index
    %7 = memref.load %arg3[%c0_4, %c1] : memref<3x4xf32, #tpu.memory_space<smem>>
    %c0_5 = arith.constant 0 : index
    %c1_6 = arith.constant 1 : index
    %c0_7 = arith.constant 0 : index
    %8 = vector.load %arg2[%c0_5, %c1_6, %c0_7] : memref<1x4x256xf32, #tpu.memory_space<vmem>>, vector<1x1x256xf32>
    %9 = vector.shape_cast %8 : vector<1x1x256xf32> to vector<1x256xf32>
    %10 = vector.broadcast %7 : f32 to vector<1x256xf32>
    %11 = arith.mulf %10, %9 : vector<1x256xf32>
    %12 = arith.addf %6, %11 : vector<1x256xf32>
    %c0_8 = arith.constant 0 : index
    %c2 = arith.constant 2 : index
    %13 = memref.load %arg3[%c0_8, %c2] : memref<3x4xf32, #tpu.memory_space<smem>>
    %c0_9 = arith.constant 0 : index
    %c2_10 = arith.constant 2 : index
    %c0_11 = arith.constant 0 : index
    %14 = vector.load %arg2[%c0_9, %c2_10, %c0_11] : memref<1x4x256xf32, #tpu.memory_space<vmem>>, vector<1x1x256xf32>
    %15 = vector.shape_cast %14 : vector<1x1x256xf32> to vector<1x256xf32>
    %16 = vector.broadcast %13 : f32 to vector<1x256xf32>
    %17 = arith.mulf %16, %15 : vector<1x256xf32>
    %18 = arith.addf %12, %17 : vector<1x256xf32>
    %c0_12 = arith.constant 0 : index
    %c3 = arith.constant 3 : index
    %19 = memref.load %arg3[%c0_12, %c3] : memref<3x4xf32, #tpu.memory_space<smem>>
    %c0_13 = arith.constant 0 : index
    %c3_14 = arith.constant 3 : index
    %c0_15 = arith.constant 0 : index
    %20 = vector.load %arg2[%c0_13, %c3_14, %c0_15] : memref<1x4x256xf32, #tpu.memory_space<vmem>>, vector<1x1x256xf32>
    %21 = vector.shape_cast %20 : vector<1x1x256xf32> to vector<1x256xf32>
    %22 = vector.broadcast %19 : f32 to vector<1x256xf32>
    %23 = arith.mulf %22, %21 : vector<1x256xf32>
    %24 = arith.addf %18, %23 : vector<1x256xf32>
    %c0_16 = arith.constant 0 : index
    %25 = memref.load %arg4[%c0_16] : memref<3xf32, #tpu.memory_space<smem>>
    %26 = vector.broadcast %25 : f32 to vector<1x256xf32>
    %27 = arith.addf %24, %26 : vector<1x256xf32>
    %cst_17 = arith.constant 0.000000e+00 : f32
    %28 = vector.broadcast %cst_17 : f32 to vector<1x256xf32>
    %c1_18 = arith.constant 1 : index
    %c0_19 = arith.constant 0 : index
    %29 = memref.load %arg3[%c1_18, %c0_19] : memref<3x4xf32, #tpu.memory_space<smem>>
    %c0_20 = arith.constant 0 : index
    %c0_21 = arith.constant 0 : index
    %c0_22 = arith.constant 0 : index
    %30 = vector.load %arg2[%c0_20, %c0_21, %c0_22] : memref<1x4x256xf32, #tpu.memory_space<vmem>>, vector<1x1x256xf32>
    %31 = vector.shape_cast %30 : vector<1x1x256xf32> to vector<1x256xf32>
    %32 = vector.broadcast %29 : f32 to vector<1x256xf32>
    %33 = arith.mulf %32, %31 : vector<1x256xf32>
    %34 = arith.addf %28, %33 : vector<1x256xf32>
    %c1_23 = arith.constant 1 : index
    %c1_24 = arith.constant 1 : index
    %35 = memref.load %arg3[%c1_23, %c1_24] : memref<3x4xf32, #tpu.memory_space<smem>>
    %c0_25 = arith.constant 0 : index
    %c1_26 = arith.constant 1 : index
    %c0_27 = arith.constant 0 : index
    %36 = vector.load %arg2[%c0_25, %c1_26, %c0_27] : memref<1x4x256xf32, #tpu.memory_space<vmem>>, vector<1x1x256xf32>
    %37 = vector.shape_cast %36 : vector<1x1x256xf32> to vector<1x256xf32>
    %38 = vector.broadcast %35 : f32 to vector<1x256xf32>
    %39 = arith.mulf %38, %37 : vector<1x256xf32>
    %40 = arith.addf %34, %39 : vector<1x256xf32>
    %c1_28 = arith.constant 1 : index
    %c2_29 = arith.constant 2 : index
    %41 = memref.load %arg3[%c1_28, %c2_29] : memref<3x4xf32, #tpu.memory_space<smem>>
    %c0_30 = arith.constant 0 : index
    %c2_31 = arith.constant 2 : index
    %c0_32 = arith.constant 0 : index
    %42 = vector.load %arg2[%c0_30, %c2_31, %c0_32] : memref<1x4x256xf32, #tpu.memory_space<vmem>>, vector<1x1x256xf32>
    %43 = vector.shape_cast %42 : vector<1x1x256xf32> to vector<1x256xf32>
    %44 = vector.broadcast %41 : f32 to vector<1x256xf32>
    %45 = arith.mulf %44, %43 : vector<1x256xf32>
    %46 = arith.addf %40, %45 : vector<1x256xf32>
    %c1_33 = arith.constant 1 : index
    %c3_34 = arith.constant 3 : index
    %47 = memref.load %arg3[%c1_33, %c3_34] : memref<3x4xf32, #tpu.memory_space<smem>>
    %c0_35 = arith.constant 0 : index
    %c3_36 = arith.constant 3 : index
    %c0_37 = arith.constant 0 : index
    %48 = vector.load %arg2[%c0_35, %c3_36, %c0_37] : memref<1x4x256xf32, #tpu.memory_space<vmem>>, vector<1x1x256xf32>
    %49 = vector.shape_cast %48 : vector<1x1x256xf32> to vector<1x256xf32>
    %50 = vector.broadcast %47 : f32 to vector<1x256xf32>
    %51 = arith.mulf %50, %49 : vector<1x256xf32>
    %52 = arith.addf %46, %51 : vector<1x256xf32>
    %c1_38 = arith.constant 1 : index
    %53 = memref.load %arg4[%c1_38] : memref<3xf32, #tpu.memory_space<smem>>
    %54 = vector.broadcast %53 : f32 to vector<1x256xf32>
    %55 = arith.addf %52, %54 : vector<1x256xf32>
    %cst_39 = arith.constant 0.000000e+00 : f32
    %56 = vector.broadcast %cst_39 : f32 to vector<1x256xf32>
    %c2_40 = arith.constant 2 : index
    %c0_41 = arith.constant 0 : index
    %57 = memref.load %arg3[%c2_40, %c0_41] : memref<3x4xf32, #tpu.memory_space<smem>>
    %c0_42 = arith.constant 0 : index
    %c0_43 = arith.constant 0 : index
    %c0_44 = arith.constant 0 : index
    %58 = vector.load %arg2[%c0_42, %c0_43, %c0_44] : memref<1x4x256xf32, #tpu.memory_space<vmem>>, vector<1x1x256xf32>
    %59 = vector.shape_cast %58 : vector<1x1x256xf32> to vector<1x256xf32>
    %60 = vector.broadcast %57 : f32 to vector<1x256xf32>
    %61 = arith.mulf %60, %59 : vector<1x256xf32>
    %62 = arith.addf %56, %61 : vector<1x256xf32>
    %c2_45 = arith.constant 2 : index
    %c1_46 = arith.constant 1 : index
    %63 = memref.load %arg3[%c2_45, %c1_46] : memref<3x4xf32, #tpu.memory_space<smem>>
    %c0_47 = arith.constant 0 : index
    %c1_48 = arith.constant 1 : index
    %c0_49 = arith.constant 0 : index
    %64 = vector.load %arg2[%c0_47, %c1_48, %c0_49] : memref<1x4x256xf32, #tpu.memory_space<vmem>>, vector<1x1x256xf32>
    %65 = vector.shape_cast %64 : vector<1x1x256xf32> to vector<1x256xf32>
    %66 = vector.broadcast %63 : f32 to vector<1x256xf32>
    %67 = arith.mulf %66, %65 : vector<1x256xf32>
    %68 = arith.addf %62, %67 : vector<1x256xf32>
    %c2_50 = arith.constant 2 : index
    %c2_51 = arith.constant 2 : index
    %69 = memref.load %arg3[%c2_50, %c2_51] : memref<3x4xf32, #tpu.memory_space<smem>>
    %c0_52 = arith.constant 0 : index
    %c2_53 = arith.constant 2 : index
    %c0_54 = arith.constant 0 : index
    %70 = vector.load %arg2[%c0_52, %c2_53, %c0_54] : memref<1x4x256xf32, #tpu.memory_space<vmem>>, vector<1x1x256xf32>
    %71 = vector.shape_cast %70 : vector<1x1x256xf32> to vector<1x256xf32>
    %72 = vector.broadcast %69 : f32 to vector<1x256xf32>
    %73 = arith.mulf %72, %71 : vector<1x256xf32>
    %74 = arith.addf %68, %73 : vector<1x256xf32>
    %c2_55 = arith.constant 2 : index
    %c3_56 = arith.constant 3 : index
    %75 = memref.load %arg3[%c2_55, %c3_56] : memref<3x4xf32, #tpu.memory_space<smem>>
    %c0_57 = arith.constant 0 : index
    %c3_58 = arith.constant 3 : index
    %c0_59 = arith.constant 0 : index
    %76 = vector.load %arg2[%c0_57, %c3_58, %c0_59] : memref<1x4x256xf32, #tpu.memory_space<vmem>>, vector<1x1x256xf32>
    %77 = vector.shape_cast %76 : vector<1x1x256xf32> to vector<1x256xf32>
    %78 = vector.broadcast %75 : f32 to vector<1x256xf32>
    %79 = arith.mulf %78, %77 : vector<1x256xf32>
    %80 = arith.addf %74, %79 : vector<1x256xf32>
    %c2_60 = arith.constant 2 : index
    %81 = memref.load %arg4[%c2_60] : memref<3xf32, #tpu.memory_space<smem>>
    %82 = vector.broadcast %81 : f32 to vector<1x256xf32>
    %83 = arith.addf %80, %82 : vector<1x256xf32>
    %84 = tpu.concatenate %27, %55, %83 in 0 : vector<1x256xf32>, vector<1x256xf32>, vector<1x256xf32> -> vector<3x256xf32>
    %c0_61 = arith.constant 0 : index
    %c0_62 = arith.constant 0 : index
    %c0_63 = arith.constant 0 : index
    %85 = vector.load %arg5[%c0_61, %c0_62, %c0_63] : memref<1x3x256xf32, #tpu.memory_space<vmem>>, vector<1x3x256xf32>
    %86 = vector.shape_cast %85 : vector<1x3x256xf32> to vector<3x256xf32>
    %87 = vector.shape_cast %84 : vector<3x256xf32> to vector<1x3x256xf32>
    tpu.vector_store %arg5[%c0_61, %c0_62, %c0_63], %87 {strides = array<i32>} : memref<1x3x256xf32, #tpu.memory_space<vmem>>, vector<1x3x256xf32>,
    return
  }
  func.func @transform_0(%arg0: i32, %arg1: i32) -> (i32, i32, i32) {
    %c0_i32 = arith.constant 0 : i32
    %c0_i32_0 = arith.constant 0 : i32
    return %arg0, %c0_i32, %arg1 : i32, i32, i32
  }
  func.func @transform_1(%arg0: i32, %arg1: i32) -> (i32, i32) {
    %c0_i32 = arith.constant 0 : i32
    %c0_i32_0 = arith.constant 0 : i32
    %c0_i32_1 = arith.constant 0 : i32
    return %c0_i32, %c0_i32_0 : i32, i32
  }
  func.func @transform_2(%arg0: i32, %arg1: i32) -> i32 {
    %c0_i32 = arith.constant 0 : i32
    %c0_i32_0 = arith.constant 0 : i32
    return %c0_i32 : i32
  }
  func.func @transform_3(%arg0: i32, %arg1: i32) -> (i32, i32, i32) {
    %c0_i32 = arith.constant 0 : i32
    %c0_i32_0 = arith.constant 0 : i32
    return %arg0, %c0_i32, %arg1 : i32, i32, i32
  }
}

</mosaic_0001>

<llo_original>
// kernel: tpu_custom_call.1
$region0: #{tpu_custom_call.1}
  #allocation0 [shape = 'u32[]', space=smem, size = 0x4, offset = 0x4, fixed_abs, tag = 'smem constant byte address 0x4 - core index']
  #allocation1 [shape = 'u32[144,128]{1,0:T(1,128)}', space=vmem, size = 0x12000, scoped, tag = 'internal scratch']
  %s0 = inlined_call_operand.hbm [shape: f32[2,4,256], index: 0, kind: input, shape index: {}]
  %s1 = inlined_call_operand.hbm [shape: f32[3,4], index: 1, kind: input, shape index: {}]
  %s2 = inlined_call_operand.vmem [shape: f32[3], index: 2, kind: input, shape index: {}]
  %s3 = inlined_call_operand.vmem [shape: f32[2,3,256], index: 3, kind: output, shape index: {}]
  %s4 = sld [smem:[#allocation0]]
  $region57: #{tpu_custom_call.1} parent=0
    _
  %s6 = ssub.s32 1, %s4
  %s7 = scalar_select 0, %s6, %s4
  $region1: #{tpu_custom_call.1} parent=0
    #allocation2 [shape = 'u8[8192]{0}', space=vmem, size = 0x2000, scoped, tag = 'input window, operand 0']
    #allocation3 [shape = 's32[2]{0}', space=sflag, size = 0x8, scoped, tag = 'scoped memory for tpu_custom_call.1']
    #allocation4 [shape = 's32[2]{0}', space=sflag, size = 0x8, scoped, tag = 'scoped memory for tpu_custom_call.1']
    #allocation5 [shape = 's32[2]{0}', space=sflag, size = 0x8, scoped, tag = 'scoped memory for tpu_custom_call.1']
    #allocation6 [shape = 'u8[2048]{0}', space=smem, size = 0x800, scoped, tag = 'input window, operand 1, single buffered']
    #allocation7 [shape = 'u8[512]{0}', space=smem, size = 0x200, scoped, tag = 'input window, operand 2, single buffered']
    %8 = vsyncpa [#allocation3], 0
    %s9 = scalar_lea.sflag [#allocation3], 1
    %10 = vsyncpa %s9, 0
    %11 = vsyncpa [#allocation4], 0
    %12 = vsyncpa [#allocation5], 0
    loop: start=0, step=1, limit=4
    $region2: #{tpu_custom_call.1} parent=1 // loop_pre_header
      _
    $region3: #{tpu_custom_call.1} parent=1 // loop_header
      %s14 = sphi 0, %s18
      %p15 = scmp.ge.s32.totalorder %s14, 4
      %s21 = sphi 0, %s33
      %s22 = sphi 0, %s29
      %s23 = sphi 0, %s21
      %s24 = sphi 0, %s22
      %s25 = sphi 0, %s23
      %s26 = sphi 0, %s24
      %s38 = sphi 0, %s40
      %s41 = sphi 0, %s38
      %s42 = sphi 0, %s41
      %s58 = sphi 0, %s42
      %s62 = sphi 0, %s62
      %s64 = sphi 0, %s62
      %s65 = sphi 0, %s64
      %s79 = sphi 0, %s65
      %s83 = sphi 0, %s83
      %s85 = sphi 0, %s83
      %s86 = sphi 0, %s85
      %s100 = sphi 0, %s86
      %s108 = sphi 0, %s110
      %s111 = sphi 0, %s108
      %s112 = sphi 0, %s111
      %s128 = sphi 0, %s112
    $region4: #{tpu_custom_call.1} parent=1 // loop_header_branch
      %17 = sbr.rel (%p15) target = $region8
    $region5: #{tpu_custom_call.1} parent=1 // loop_body
      %s19 = ssub.s32 %s14, 1
      %s20 = ssub.s32 %s14, 2
      %s27 = sadd.s32 1, %s22
      %p28 = scmp.ge.s32.totalorder %s27, 1
      %s29 = scalar_select %p28, 0, %s27
      %s30 = sadd.s32 1, %s21
      %s31 = scalar_select %p28, %s30, %s21
      %p32 = scmp.ge.s32.totalorder %s31, 2
      %s33 = scalar_select %p32, 0, %s31
      %s34 = ssub.s32 %s21, %s33
      %s35 = ssub.s32 %s22, %s29
      %s36 = sor.u32 %s34, %s35
      %p37 = scmp.eq.s32.totalorder %s36, 0
      %s39 = sadd.s32 %s38, 1
      %s40 = scalar_select %p37, %s38, %s39
      %p43 = pneg %p37
      %p44 = scmp.eq.s32.totalorder %s14, 1
      %p45 = por %p43, %p44
      %p46 = scmp.ne.s32.totalorder %s38, %s41
      %p47 = scmp.eq.s32.totalorder %s14, 0
      %p48 = por %p46, %p47
      %p49 = scmp.ne.s32.totalorder %s38, %s41
      %p50 = scmp.eq.s32.totalorder %s19, 1
      %p51 = por %p49, %p50
      %p52 = scmp.ne.s32.totalorder %s41, %s42
      %p53 = scmp.eq.s32.totalorder %s19, 0
      %p54 = por %p52, %p53
      %p55 = scmp.ne.s32.totalorder %s41, %s42
      %p56 = scmp.eq.s32.totalorder %s20, 1
      %p57 = por %p55, %p56
      %p59 = scmp.ne.s32.totalorder %s42, %s58
      %p60 = scmp.eq.s32.totalorder %s20, 0
      %p61 = por %p59, %p60
      %s63 = sadd.s32 %s62, 1
      %p66 = scmp.eq.s32.totalorder %s14, 1
      %p67 = scmp.ne.s32.totalorder %s62, %s64
      %p68 = scmp.eq.s32.totalorder %s14, 0
      %p69 = por %p67, %p68
      %p70 = scmp.ne.s32.totalorder %s62, %s64
      %p71 = scmp.eq.s32.totalorder %s19, 1
      %p72 = por %p70, %p71
      %p73 = scmp.ne.s32.totalorder %s64, %s65
      %p74 = scmp.eq.s32.totalorder %s19, 0
      %p75 = por %p73, %p74
      %p76 = scmp.ne.s32.totalorder %s64, %s65
      %p77 = scmp.eq.s32.totalorder %s20, 1
      %p78 = por %p76, %p77
      %p80 = scmp.ne.s32.totalorder %s65, %s79
      %p81 = scmp.eq.s32.totalorder %s20, 0
      %p82 = por %p80, %p81
      %s84 = sadd.s32 %s83, 1
      %p87 = scmp.eq.s32.totalorder %s14, 1
      %p88 = scmp.ne.s32.totalorder %s83, %s85
      %p89 = scmp.eq.s32.totalorder %s14, 0
      %p90 = por %p88, %p89
      %p91 = scmp.ne.s32.totalorder %s83, %s85
      %p92 = scmp.eq.s32.totalorder %s19, 1
      %p93 = por %p91, %p92
      %p94 = scmp.ne.s32.totalorder %s85, %s86
      %p95 = scmp.eq.s32.totalorder %s19, 0
      %p96 = por %p94, %p95
      %p97 = scmp.ne.s32.totalorder %s85, %s86
      %p98 = scmp.eq.s32.totalorder %s20, 1
      %p99 = por %p97, %p98
      %p101 = scmp.ne.s32.totalorder %s86, %s100
      %p102 = scmp.eq.s32.totalorder %s20, 0
      %p103 = por %p101, %p102
      %s104 = ssub.s32 %s21, %s33
      %s105 = ssub.s32 %s22, %s29
      %s106 = sor.u32 %s104, %s105
      %p107 = scmp.eq.s32.totalorder %s106, 0
      %s109 = sadd.s32 %s108, 1
      %s110 = scalar_select %p107, %s108, %s109
      %p113 = pneg %p107
      %p114 = scmp.eq.s32.totalorder %s14, 1
      %p115 = por %p113, %p114
      %p116 = scmp.ne.s32.totalorder %s108, %s111
      %p117 = scmp.eq.s32.totalorder %s14, 0
      %p118 = por %p116, %p117
      %p119 = scmp.ne.s32.totalorder %s108, %s111
      %p120 = scmp.eq.s32.totalorder %s19, 1
      %p121 = por %p119, %p120
      %p122 = scmp.ne.s32.totalorder %s111, %s112
      %p123 = scmp.eq.s32.totalorder %s19, 0
      %p124 = por %p122, %p123
      %p125 = scmp.ne.s32.totalorder %s111, %s112
      %p126 = scmp.eq.s32.totalorder %s20, 1
      %p127 = por %p125, %p126
      %p129 = scmp.ne.s32.totalorder %s112, %s128
      %p130 = scmp.eq.s32.totalorder %s20, 0
      %p131 = por %p129, %p130
      %p132 = scmp.le.s32.totalorder 1, %s14
      %p133 = scmp.lt.s32.totalorder %s14, 3
      %p134 = pnand %p132, %p133
      %p135 = pneg %p134
      // Predicated region
      $region9: #{tpu_custom_call.1} parent=5 // pred_check
        _
      $region10: #{tpu_custom_call.1} parent=5 // pred_check_branch
        %137 = sbr.rel (%p134) target = $region12
      $region11: #{tpu_custom_call.1} parent=5 // pred_region
        %s138 = ssub.s32 %s14, 1
        // Predicated region
        $region13: #{tpu_custom_call.1} parent=11 // pred_check
          %p139 = pneg %p75
        $region14: #{tpu_custom_call.1} parent=11 // pred_check_branch
          %141 = sbr.rel (%p139) target = $region16
        $region15: #{tpu_custom_call.1} parent=11 // pred_region
          %s143 = ssub.s32 64, 64
          %144 = vsyncadd [#allocation4], %s143
          %147 = dma.hbm_to_smem %s1, 64, [#allocation6], [#allocation4]
        $region16: #{tpu_custom_call.1} parent=11 // pred_fallthru
          _
        // Predicated region
        $region17: #{tpu_custom_call.1} parent=11 // pred_check
          %p148 = pneg %p96
        $region18: #{tpu_custom_call.1} parent=11 // pred_check_branch
          %150 = sbr.rel (%p148) target = $region20
        $region19: #{tpu_custom_call.1} parent=11 // pred_region
          %s152 = ssub.s32 16, 16
          %153 = vsyncadd [#allocation5], %s152
          %s155 = sshll.u32 %s2, 4
          %s156 = int_to_ptr.vmem [resolvable:$true] %s155
          %158 = dma.vmem_to_smem %s156, 16, [#allocation7], [#allocation5]
        $region20: #{tpu_custom_call.1} parent=11 // pred_fallthru
          _
      $region12: #{tpu_custom_call.1} parent=5 // pred_fallthru
        _
      %p159 = scmp.lt.s32.totalorder %s14, 2
      // Predicated region
      $region21: #{tpu_custom_call.1} parent=5 // pred_check
        %p160 = pneg %p159
      $region22: #{tpu_custom_call.1} parent=5 // pred_check_branch
        %162 = sbr.rel (%p160) target = $region24
      $region23: #{tpu_custom_call.1} parent=5 // pred_region
        // Predicated region
        $region25: #{tpu_custom_call.1} parent=23 // pred_check
          %p163 = pneg %p48
        $region26: #{tpu_custom_call.1} parent=23 // pred_check_branch
          %165 = sbr.rel (%p163) target = $region28
        $region27: #{tpu_custom_call.1} parent=23 // pred_region
          %s166 = sand.u32 %s38, 1
          %s167 = scalar_lea.sflag [#allocation3], %s166
          %s168 = sand.u32 %s38, 1
          %s169 = smul.addr %s168, 8
          %s170 = scalar_lea.vmem [#allocation2], %s169
          %s171 = smul.u32 2, %s22
          %s173 = ssub.s32 128, 128
          %174 = vsyncadd %s167, %s173
          %s175 = smul.addr %s21, 2
          %s176 = sadd.s32 %s171, %s175
          %s177 = smul.addr %s176, 64
          %s178 = scalar_lea.hbm %s0, %s177
          %s180 = sshll.u32 %s170, 4
          %s181 = int_to_ptr.vmem [resolvable:$true] %s180
          %183 = dma.hbm_to_vmem [thread:$0]  %s178, 128, %s181, %s167
        $region28: #{tpu_custom_call.1} parent=23 // pred_fallthru
          _
      $region24: #{tpu_custom_call.1} parent=5 // pred_fallthru
        _
      %p184 = scmp.le.s32.totalorder 1, %s14
      %p185 = scmp.lt.s32.totalorder %s14, 3
      %p186 = pnand %p184, %p185
      %p187 = pneg %p186
      // Predicated region
      $region29: #{tpu_custom_call.1} parent=5 // pred_check
        _
      $region30: #{tpu_custom_call.1} parent=5 // pred_check_branch
        %189 = sbr.rel (%p186) target = $region32
      $region31: #{tpu_custom_call.1} parent=5 // pred_region
        %s190 = ssub.s32 %s14, 1
        %s191 = sand.u32 %s41, 1
        %s192 = scalar_lea.sflag [#allocation3], %s191
        %s193 = sand.u32 %s41, 1
        %s194 = smul.addr %s193, 8
        %s195 = scalar_lea.vmem [#allocation2], %s194
        // Predicated region
        $region33: #{tpu_custom_call.1} parent=31 // pred_check
          %p196 = pneg %p54
        $region34: #{tpu_custom_call.1} parent=31 // pred_check_branch
          %198 = sbr.rel (%p196) target = $region36
        $region35: #{tpu_custom_call.1} parent=31 // pred_region
          %199 = dma.done %s192, 128
        $region36: #{tpu_custom_call.1} parent=31 // pred_fallthru
          _
        // Predicated region
        $region37: #{tpu_custom_call.1} parent=31 // pred_check
          %p200 = pneg %p75
        $region38: #{tpu_custom_call.1} parent=31 // pred_check_branch
          %202 = sbr.rel (%p200) target = $region40
        $region39: #{tpu_custom_call.1} parent=31 // pred_region
          %203 = dma.done [#allocation4], 64
        $region40: #{tpu_custom_call.1} parent=31 // pred_fallthru
          _
        // Predicated region
        $region41: #{tpu_custom_call.1} parent=31 // pred_check
          %p204 = pneg %p96
        $region42: #{tpu_custom_call.1} parent=31 // pred_check_branch
          %206 = sbr.rel (%p204) target = $region44
        $region43: #{tpu_custom_call.1} parent=31 // pred_region
          %207 = dma.done [#allocation5], 16
        $region44: #{tpu_custom_call.1} parent=31 // pred_fallthru
          _
        %208 = sfence
        %s209 = sand.u32 %s41, 1
        %s210 = scalar_lea.sflag [#allocation3], %s209
        %s211 = sand.u32 %s41, 1
        %s212 = smul.addr %s211, 8
        %s213 = scalar_lea.vmem [#allocation2], %s212
        %p214 = pneg %p54
        %p215 = pneg %p51
        %p216 = pneg %p75
        %p217 = pneg %p72
        %p218 = pneg %p96
        %p219 = pneg %p93
        %p220 = pneg %p124
        %p221 = pneg %p121
        %s222 = smul.u32 2, %s24
        %p223 = scmp.lt.s32.totalorder %s23, 1
        %s224 = scalar_select %p223, %s23, 1
        %p225 = scmp.lt.s32.totalorder %s222, 1
        %s226 = scalar_select %p225, %s222, 1
        %s227 = smul.addr %s224, 2
        %s228 = sadd.s32 %s226, %s227
        %s229 = smul.addr %s228, 4
        %s230 = scalar_lea.vmem %s3, %s229
        %s231 = smul.u32 2, %s24
        %s232 = smul.u32 2, %s24
        %p233 = scmp.lt.s32.totalorder %s23, 1
        %s234 = scalar_select %p233, %s23, 1
        %p235 = scmp.lt.s32.totalorder %s232, 1
        %s236 = scalar_select %p235, %s232, 1
        %s237 = smul.addr %s234, 2
        %s238 = sadd.s32 %s236, %s237
        %s239 = smul.addr %s238, 4
        %s240 = scalar_lea.vmem %s3, %s239
        %s241 = smul.u32 2, %s24
        %s242 = sld [smem:[#allocation6]]
        %v243 = vld [vmem:[%s195] ss:$4 sm:$0x3]
        %v244 = vstv %s242
        %v245 = vmul.f32 %v244, %v243
        %v246 = vadd.f32 %v245, 0.0
        %s247 = sld [smem:[#allocation6 + $0x1]]
        %s248 = scalar_lea.vmem %s195, 1 [#allocation2]
        %v249 = vld [vmem:[%s248] ss:$4 sm:$0x3]
        %v250 = vstv %s247
        %v251 = vmul.f32 %v250, %v249
        %v252 = vadd.f32 %v246, %v251
        %s253 = sld [smem:[#allocation6 + $0x2]]
        %s254 = scalar_lea.vmem %s195, 2 [#allocation2]
        %v255 = vld [vmem:[%s254] ss:$4 sm:$0x3]
        %v256 = vstv %s253
        %v257 = vmul.f32 %v256, %v255
        %v258 = vadd.f32 %v252, %v257
        %s259 = sld [smem:[#allocation6 + $0x3]]
        %s260 = scalar_lea.vmem %s195, 3 [#allocation2]
        %v261 = vld [vmem:[%s260] ss:$4 sm:$0x3]
        %v262 = vstv %s259
        %v263 = vmul.f32 %v262, %v261
        %v264 = vadd.f32 %v258, %v263
        %s265 = sld [smem:[#allocation7]]
        %v266 = vstv %s265
        %v267 = vadd.f32 %v264, %v266
        %s268 = sld [smem:[#allocation6 + $0x80]]
        %v269 = vstv %s268
        %v270 = vmul.f32 %v269, %v243
        %v271 = vadd.f32 %v270, 0.0
        %s272 = sld [smem:[#allocation6 + $0x81]]
        %v273 = vstv %s272
        %v274 = vmul.f32 %v273, %v249
        %v275 = vadd.f32 %v271, %v274
        %s276 = sld [smem:[#allocation6 + $0x82]]
        %v277 = vstv %s276
        %v278 = vmul.f32 %v277, %v255
        %v279 = vadd.f32 %v275, %v278
        %s280 = sld [smem:[#allocation6 + $0x83]]
        %v281 = vstv %s280
        %v282 = vmul.f32 %v281, %v261
        %v283 = vadd.f32 %v279, %v282
        %s284 = sld [smem:[#allocation7 + $0x1]]
        %v285 = vstv %s284
        %v286 = vadd.f32 %v283, %v285
        %s287 = sld [smem:[#allocation6 + $0x100]]
        %v288 = vstv %s287
        %v289 = vmul.f32 %v288, %v243
        %v290 = vadd.f32 %v289, 0.0
        %s291 = sld [smem:[#allocation6 + $0x101]]
        %v292 = vstv %s291
        %v293 = vmul.f32 %v292, %v249
        %v294 = vadd.f32 %v290, %v293
        %s295 = sld [smem:[#allocation6 + $0x102]]
        %v296 = vstv %s295
        %v297 = vmul.f32 %v296, %v255
        %v298 = vadd.f32 %v294, %v297
        %s299 = sld [smem:[#allocation6 + $0x103]]
        %v300 = vstv %s299
        %v301 = vmul.f32 %v300, %v261
        %v302 = vadd.f32 %v298, %v301
        %s303 = sld [smem:[#allocation7 + $0x2]]
        %v304 = vstv %s303
        %v305 = vadd.f32 %v302, %v304
        %v307 = vlaneseq
        %v308 = vshrl.u32 %v307, 7
        %v309 = vsub.s32 0, %v308
        %v310 = vrot.slane %v267, %v309
        %v311 = vlaneseq
        %v312 = vshrl.u32 %v311, 7
        %v313 = vsub.s32 1, %v312
        %v314 = vrot.slane %v267, %v313
        %v318 = vlaneseq
        %v319 = vshrl.u32 %v318, 7
        %v320 = vsub.s32 0, %v319
        %v321 = vrot.slane %v286, %v320
        %v322 = vlaneseq
        %v323 = vshrl.u32 %v322, 7
        %v324 = vsub.s32 1, %v323
        %v325 = vrot.slane %v286, %v324
        %v329 = vlaneseq
        %v330 = vshrl.u32 %v329, 7
        %v331 = vsub.s32 0, %v330
        %v332 = vrot.slane %v305, %v331
        %v333 = vlaneseq
        %v334 = vshrl.u32 %v333, 7
        %v335 = vsub.s32 1, %v334
        %v336 = vrot.slane %v305, %v335
        %vm339 = vcmask 1040384
        %v340 = vsel %vm339, %v310, %v321
        %v341 = vsel %vm339, %v314, %v325
        %vm342 = vcmask 1041408
        %v343 = vsel %vm342, %v340, %v332
        %v344 = vsel %vm342, %v341, %v336
        %v347 = vcombine.low %v343, %v344
        %349 = vst [vmem:[%s240] sm:$0x77] %v347
        %s350 = smul.u32 2, %s24
        %p351 = scmp.lt.s32.totalorder %s23, 1
        %s352 = scalar_select %p351, %s23, 1
        %p353 = scmp.lt.s32.totalorder %s350, 1
        %s354 = scalar_select %p353, %s350, 1
        %s355 = smul.addr %s352, 2
        %s356 = sadd.s32 %s354, %s355
        %s357 = smul.addr %s356, 4
        %s358 = scalar_lea.vmem %s3, %s357
        // Predicated region
        $region45: #{tpu_custom_call.1} parent=31 // pred_check
          %p359 = pneg %p121
        $region46: #{tpu_custom_call.1} parent=31 // pred_check_branch
          %361 = sbr.rel (%p359) target = $region48
        $region47: #{tpu_custom_call.1} parent=31 // pred_region
          %s362 = smul.u32 2, %s24
        $region48: #{tpu_custom_call.1} parent=31 // pred_fallthru
          _
      $region32: #{tpu_custom_call.1} parent=5 // pred_fallthru
        _
      %p363 = scmp.le.s32.totalorder 2, %s14
      // Predicated region
      $region49: #{tpu_custom_call.1} parent=5 // pred_check
        %p364 = pneg %p363
      $region50: #{tpu_custom_call.1} parent=5 // pred_check_branch
        %366 = sbr.rel (%p364) target = $region52
      $region51: #{tpu_custom_call.1} parent=5 // pred_region
        %s367 = ssub.s32 %s14, 2
        // Predicated region
        $region53: #{tpu_custom_call.1} parent=51 // pred_check
          %p368 = pneg %p127
        $region54: #{tpu_custom_call.1} parent=51 // pred_check_branch
          %370 = sbr.rel (%p368) target = $region56
        $region55: #{tpu_custom_call.1} parent=51 // pred_region
          %s371 = smul.u32 2, %s26
          %p372 = scmp.lt.s32.totalorder %s25, 1
          %s373 = scalar_select %p372, %s25, 1
          %p374 = scmp.lt.s32.totalorder %s371, 1
          %s375 = scalar_select %p374, %s371, 1
          %s376 = smul.addr %s373, 2
          %s377 = sadd.s32 %s375, %s376
          %s378 = smul.addr %s377, 4
          %s379 = scalar_lea.vmem %s3, %s378
        $region56: #{tpu_custom_call.1} parent=51 // pred_fallthru
          _
      $region52: #{tpu_custom_call.1} parent=5 // pred_fallthru
        _
    $region6: #{tpu_custom_call.1} parent=1 // loop_footer
      %s18 = sadd.s32 1, %s14
    $region7: #{tpu_custom_call.1} parent=1 // loop_footer_branch
      %13 = sbr.rel target = $region3
    $region8: #{tpu_custom_call.1} parent=1 // loop_exit
      _
    %380 = vsyncpa [#allocation3], 1
    %s381 = scalar_lea.sflag [#allocation3], 1
    %382 = vsyncpa %s381, 1
    %383 = vsyncpa [#allocation4], 1
    %s384 = scalar_lea.sflag [#allocation4], 1
    %385 = vsyncpa %s384, 1
    %386 = vsyncpa [#allocation5], 1
    %s387 = scalar_lea.sflag [#allocation5], 1
    %388 = vsyncpa %s387, 1

</llo_original>
